<compile_context>
chip_gen: v7x
topology: tpu7x:2x2x1
jax: 0.10.0
libtpu: 0.0.40
codegen_flags: <defaults>
</compile_context>

<pallas_src>
import functools

import jax
import jax.numpy as jnp
from jax.experimental import pallas as pl
from jax.experimental.pallas import tpu as pltpu

LANES = 128
SUBLANES = 8
MAX_BLOCK_ROWS = 2048  # (2048, 128) f32 block = 1 MiB; x2 inputs x2 buffers = 4 MiB VMEM


def _round_up(x, m):
    return ((x + m - 1) // m) * m


def _bce_kernel(p_ref, t_ref, out_ref, *, block_rows, blocks_per_split,
                valid_rows, need_mask):
    c = pl.program_id(0)  # partial-sum split ("parallel" axis, 2 TCs on v7x)
    i = pl.program_id(1)  # block reduction ("arbitrary" axis)

    @pl.when(i == 0)
    def _():
        out_ref[...] = jnp.zeros_like(out_ref)

    p = p_ref[...].astype(jnp.float32)
    t = t_ref[...].astype(jnp.float32)

    # PyTorch nn.BCELoss clamps each log term at -100 to avoid -inf.
    log_p = jnp.maximum(jnp.log(p), -100.0)
    log_1mp = jnp.maximum(jnp.log1p(-p), -100.0)
    loss = -(t * log_p + (1.0 - t) * log_1mp)

    if need_mask:
        # Mask rows past the real extent (partial / duplicated last block).
        start = (c * blocks_per_split + i) * block_rows
        row = start + jax.lax.broadcasted_iota(jnp.int32, (block_rows, 1), 0)
        loss = jnp.where(row < valid_rows, loss, 0.0)

    # Per-(sublane, lane) partial sums: pure VPU adds, no cross-lane reduce.
    out_ref[...] += loss.reshape(
        block_rows // SUBLANES, SUBLANES, LANES).sum(axis=0)[None]


def bce_loss_2d(predict, target):
    """mean BCE over all elements == nn.BCELoss()(predict.view(-1), target.view(-1))."""
    assert predict.shape == target.shape
    n = int(predict.size)

    p_flat = predict.reshape(-1)
    t_flat = target.reshape(-1)

    rows = pl.cdiv(n, LANES)
    n_padded = rows * LANES
    if n_padded != n:
        # Zero-pad only when not lane-aligned.  With p=0, t=0 the clamped loss
        # is exactly 0, so no element-level mask is needed.
        p_flat = jnp.pad(p_flat, (0, n_padded - n))
        t_flat = jnp.pad(t_flat, (0, n_padded - n))

    p2d = p_flat.reshape(rows, LANES)
    t2d = t_flat.reshape(rows, LANES)

    block_rows = min(MAX_BLOCK_ROWS, _round_up(rows, SUBLANES))
    total_blocks = pl.cdiv(rows, block_rows)

    # Split the reduction into 2 partial sums so the leading axis is "parallel"
    # (dual TensorCores on v7x); single split when there is only one block.
    num_splits = 2 if total_blocks >= 2 else 1
    blocks_per_split = pl.cdiv(total_blocks, num_splits)

    covered_rows = num_splits * blocks_per_split * block_rows
    need_mask = covered_rows != rows

    def in_index_map(c, i):
        # Clamp so no block slot is entirely out of bounds; clamped/duplicate
        # reads are zeroed by the logical-row mask inside the kernel.
        return (jnp.minimum(c * blocks_per_split + i, total_blocks - 1), 0)

    kernel = functools.partial(
        _bce_kernel,
        block_rows=block_rows,
        blocks_per_split=blocks_per_split,
        valid_rows=rows,
        need_mask=need_mask,
    )

    partial_sums = pl.pallas_call(
        kernel,
        out_shape=jax.ShapeDtypeStruct((num_splits, SUBLANES, LANES), jnp.float32),
        grid_spec=pltpu.PrefetchScalarGridSpec(
            num_scalar_prefetch=0,
            grid=(num_splits, blocks_per_split),
            in_specs=[
                pl.BlockSpec((block_rows, LANES), in_index_map),
                pl.BlockSpec((block_rows, LANES), in_index_map),
            ],
            out_specs=pl.BlockSpec((1, SUBLANES, LANES), lambda c, i: (c, 0, 0)),
        ),
        compiler_params=pltpu.CompilerParams(
            dimension_semantics=("parallel", "arbitrary"),
        ),
    )(p2d, t2d)

    # Tiny final reduction + mean in plain XLA.
    return jnp.sum(partial_sums) / n


if __name__ == "__main__":
    key = jax.random.PRNGKey(0)
    k1, k2 = jax.random.split(key)

    # NCHW shapes consistent with a 2D segmentation head.
    B, C, H, W = 2, 4, 16, 16
    predict = jax.nn.sigmoid(jax.random.normal(k1, (B, C, H, W), dtype=jnp.float32))
    target = (jax.random.uniform(k2, (B, C, H, W), dtype=jnp.float32) > 0.5).astype(
        jnp.float32
    )

    loss = bce_loss_2d(predict, target)
    jax.block_until_ready(loss)

    # Pure-JAX reference check (same clamped-BCE formula as nn.BCELoss).
    p = predict.reshape(-1)
    t = target.reshape(-1)
    ref = jnp.mean(
        -(t * jnp.maximum(jnp.log(p), -100.0)
          + (1.0 - t) * jnp.maximum(jnp.log1p(-p), -100.0))
    )
    assert jnp.allclose(loss, ref, rtol=1e-5, atol=1e-6), (loss, ref)

    print("KERNEL_OK")
</pallas_src>

<mosaic_0001>
module attributes {stable_mosaic.version = 11 : i64} {
  func.func @_bce_kernel(%arg0: i32, %arg1: i32, %arg2: memref<16x128xf32, #tpu.memory_space<vmem>>, %arg3: memref<16x128xf32, #tpu.memory_space<vmem>>, %arg4: memref<1x8x128xf32, #tpu.memory_space<vmem>>) attributes {dimension_semantics = [#tpu.dimension_semantics<parallel>, #tpu.dimension_semantics<arbitrary>], iteration_bounds = array<i64: 1, 1>, scalar_prefetch = 0 : i64, scratch_operands = 0 : i64, tpu.core_type = #tpu.core_type<tc>, window_params = [{transform_indices = @transform_0, window_bounds = array<i64: 16, 128>}, {transform_indices = @transform_1, window_bounds = array<i64: 16, 128>}, {transform_indices = @transform_2, window_bounds = array<i64: 1, 8, 128>}]} {
    %c0_i32 = arith.constant 0 : i32
    %0 = arith.cmpi eq, %arg1, %c0_i32 : i32
    %1 = arith.extui %0 : i1 to i32
    %c0_i32_0 = arith.constant 0 : i32
    %2 = arith.cmpi ne, %1, %c0_i32_0 : i32
    scf.if %2 {
      %cst_15 = arith.constant 0.000000e+00 : f32
      %26 = vector.broadcast %cst_15 : f32 to vector<1x8x128xf32>
      %c0_16 = arith.constant 0 : index
      %c0_17 = arith.constant 0 : index
      %c0_18 = arith.constant 0 : index
      %27 = vector.load %arg4[%c0_16, %c0_17, %c0_18] : memref<1x8x128xf32, #tpu.memory_space<vmem>>, vector<1x8x128xf32>
      tpu.vector_store %arg4[%c0_16, %c0_17, %c0_18], %26 {strides = array<i32>} : memref<1x8x128xf32, #tpu.memory_space<vmem>>, vector<1x8x128xf32>,
    } else {
    }
    %c0 = arith.constant 0 : index
    %c0_1 = arith.constant 0 : index
    %3 = vector.load %arg2[%c0, %c0_1] : memref<16x128xf32, #tpu.memory_space<vmem>>, vector<16x128xf32>
    %c0_2 = arith.constant 0 : index
    %c0_3 = arith.constant 0 : index
    %4 = vector.load %arg3[%c0_2, %c0_3] : memref<16x128xf32, #tpu.memory_space<vmem>>, vector<16x128xf32>
    %5 = math.log %3 : vector<16x128xf32>
    %cst = arith.constant -1.000000e+02 : f32
    %6 = vector.broadcast %cst : f32 to vector<16x128xf32>
    %7 = arith.maximumf %5, %6 : vector<16x128xf32>
    %cst_4 = arith.constant 0.000000e+00 : f32
    %8 = vector.broadcast %cst_4 : f32 to vector<16x128xf32>
    %9 = arith.subf %8, %3 : vector<16x128xf32>
    %10 = math.log1p %9 : vector<16x128xf32>
    %cst_5 = arith.constant -1.000000e+02 : f32
    %11 = vector.broadcast %cst_5 : f32 to vector<16x128xf32>
    %12 = arith.maximumf %10, %11 : vector<16x128xf32>
    %13 = arith.mulf %4, %7 : vector<16x128xf32>
    %cst_6 = arith.constant 1.000000e+00 : f32
    %14 = vector.broadcast %cst_6 : f32 to vector<16x128xf32>
    %15 = arith.subf %14, %4 : vector<16x128xf32>
    %16 = arith.mulf %15, %12 : vector<16x128xf32>
    %17 = arith.addf %13, %16 : vector<16x128xf32>
    %cst_7 = arith.constant 0.000000e+00 : f32
    %18 = vector.broadcast %cst_7 : f32 to vector<16x128xf32>
    %19 = arith.subf %18, %17 : vector<16x128xf32>
    %c0_8 = arith.constant 0 : index
    %c0_9 = arith.constant 0 : index
    %c0_10 = arith.constant 0 : index
    %20 = vector.load %arg4[%c0_8, %c0_9, %c0_10] : memref<1x8x128xf32, #tpu.memory_space<vmem>>, vector<1x8x128xf32>
    %21 = vector.shape_cast %19 : vector<16x128xf32> to vector<2x8x128xf32>
    %cst_11 = arith.constant dense<0.000000e+00> : vector<8x128xf32>
    %22 = vector.multi_reduction <add>, %21, %cst_11 [0] : vector<2x8x128xf32> to vector<8x128xf32>
    %23 = vector.shape_cast %22 : vector<8x128xf32> to vector<1x8x128xf32>
    %24 = arith.addf %20, %23 : vector<1x8x128xf32>
    %c0_12 = arith.constant 0 : index
    %c0_13 = arith.constant 0 : index
    %c0_14 = arith.constant 0 : index
    %25 = vector.load %arg4[%c0_12, %c0_13, %c0_14] : memref<1x8x128xf32, #tpu.memory_space<vmem>>, vector<1x8x128xf32>
    tpu.vector_store %arg4[%c0_12, %c0_13, %c0_14], %24 {strides = array<i32>} : memref<1x8x128xf32, #tpu.memory_space<vmem>>, vector<1x8x128xf32>,
    return
  }
  func.func @transform_0(%arg0: i32, %arg1: i32) -> (i32, i32) {
    %c1_i32 = arith.constant 1 : i32
    %0 = arith.muli %arg0, %c1_i32 : i32
    %1 = arith.addi %0, %arg1 : i32
    %c0_i32 = arith.constant 0 : i32
    %2 = arith.minsi %1, %c0_i32 : i32
    %c0_i32_0 = arith.constant 0 : i32
    %c0_i32_1 = arith.constant 0 : i32
    return %2, %c0_i32_0 : i32, i32
  }
  func.func @transform_1(%arg0: i32, %arg1: i32) -> (i32, i32) {
    %c1_i32 = arith.constant 1 : i32
    %0 = arith.muli %arg0, %c1_i32 : i32
    %1 = arith.addi %0, %arg1 : i32
    %c0_i32 = arith.constant 0 : i32
    %2 = arith.minsi %1, %c0_i32 : i32
    %c0_i32_0 = arith.constant 0 : i32
    %c0_i32_1 = arith.constant 0 : i32
    return %2, %c0_i32_0 : i32, i32
  }
  func.func @transform_2(%arg0: i32, %arg1: i32) -> (i32, i32, i32) {
    %c0_i32 = arith.constant 0 : i32
    %c0_i32_0 = arith.constant 0 : i32
    %c0_i32_1 = arith.constant 0 : i32
    return %arg0, %c0_i32, %c0_i32_0 : i32, i32, i32
  }
}

</mosaic_0001>

<llo_original>
// kernel: tpu_custom_call.1
$region0: #{tpu_custom_call.1}
  #allocation0 [shape = 'u32[]', space=smem, size = 0x4, offset = 0x4, fixed_abs, tag = 'smem constant byte address 0x4 - core index']
  #allocation1 [shape = 'u32[144,128]{1,0:T(1,128)}', space=vmem, size = 0x12000, scoped, tag = 'internal scratch']
  %s0 = inlined_call_operand.hbm [shape: f32[16,128], index: 0, kind: input, shape index: {}]
  %s1 = inlined_call_operand.hbm [shape: f32[16,128], index: 1, kind: input, shape index: {}]
  %s2 = inlined_call_operand.hbm [shape: f32[1,8,128], index: 2, kind: output, shape index: {}]
  %s3 = sld [smem:[#allocation0]]
  $region30: #{tpu_custom_call.1} parent=0
    _
  %s5 = ssub.s32 1, %s3
  %s6 = scalar_select 0, %s5, %s3
  $region1: #{tpu_custom_call.1} parent=0
    #allocation2 [shape = 'u8[8192]{0}', space=vmem, size = 0x2000, scoped, tag = 'input window, operand 0, single buffered']
    #allocation3 [shape = 's32[1]{0}', space=sflag, size = 0x4, scoped, tag = 'scoped memory for tpu_custom_call.1']
    #allocation4 [shape = 's32[1]{0}', space=sflag, size = 0x4, scoped, tag = 'scoped memory for tpu_custom_call.1']
    #allocation5 [shape = 'u8[8192]{0}', space=vmem, size = 0x2000, scoped, tag = 'input window, operand 1, single buffered']
    #allocation6 [shape = 's32[1]{0}', space=sflag, size = 0x4, scoped, tag = 'scoped memory for tpu_custom_call.1']
    #allocation7 [shape = 'u8[4096]{0}', space=vmem, size = 0x1000, scoped, tag = 'output window, operand 0, single buffered']
    %7 = vsyncpa [#allocation3], 0
    %8 = vsyncpa [#allocation6], 0
    %9 = vsyncpa [#allocation4], 0
    // Predicated region
    $region2: #{tpu_custom_call.1} parent=1 // pred_check
      _
    $region3: #{tpu_custom_call.1} parent=1 // pred_check_branch
      %11 = sbr.rel (0) target = $region5
    $region4: #{tpu_custom_call.1} parent=1 // pred_region
      %s12 = sadd.s32 0, 0
      %p13 = scmp.lt.s32.totalorder %s12, 0
      %s14 = scalar_select %p13, %s12, 0
      %s15 = smul.u32 2, %s14
      %s17 = ssub.s32 256, 256
      %18 = vsyncadd [#allocation3], %s17
      %s19 = smul.addr %s15, 128
      %s20 = scalar_lea.hbm %s0, %s19
      %s21 = sshll.u32 [#allocation2], 4
      %s22 = int_to_ptr.vmem [resolvable:$true] %s21
      %27 = dma.hbm_to_vmem [thread:$0]  %s20, 256, %s22, [#allocation3], 128, 128, 8
    $region5: #{tpu_custom_call.1} parent=1 // pred_fallthru
      _
    // Predicated region
    $region6: #{tpu_custom_call.1} parent=1 // pred_check
      _
    $region7: #{tpu_custom_call.1} parent=1 // pred_check_branch
      %29 = sbr.rel (0) target = $region9
    $region8: #{tpu_custom_call.1} parent=1 // pred_region
      %s30 = sadd.s32 0, 0
      %p31 = scmp.lt.s32.totalorder %s30, 0
      %s32 = scalar_select %p31, %s30, 0
      %s33 = smul.u32 2, %s32
      %s35 = ssub.s32 256, 256
      %36 = vsyncadd [#allocation6], %s35
      %s37 = smul.addr %s33, 128
      %s38 = scalar_lea.hbm %s1, %s37
      %s39 = sshll.u32 [#allocation5], 4
      %s40 = int_to_ptr.vmem [resolvable:$true] %s39
      %45 = dma.hbm_to_vmem [thread:$0]  %s38, 256, %s40, [#allocation6], 128, 128, 8
    $region9: #{tpu_custom_call.1} parent=1 // pred_fallthru
      _
    // Predicated region
    $region10: #{tpu_custom_call.1} parent=1 // pred_check
      _
    $region11: #{tpu_custom_call.1} parent=1 // pred_check_branch
      %47 = sbr.rel (0) target = $region13
    $region12: #{tpu_custom_call.1} parent=1 // pred_region
      %48 = dma.done [#allocation3], 256
    $region13: #{tpu_custom_call.1} parent=1 // pred_fallthru
      _
    // Predicated region
    $region14: #{tpu_custom_call.1} parent=1 // pred_check
      _
    $region15: #{tpu_custom_call.1} parent=1 // pred_check_branch
      %50 = sbr.rel (0) target = $region17
    $region16: #{tpu_custom_call.1} parent=1 // pred_region
      %51 = dma.done [#allocation6], 256
    $region17: #{tpu_custom_call.1} parent=1 // pred_fallthru
      _
    %s52 = sadd.s32 0, 0
    %p53 = scmp.lt.s32.totalorder %s52, 0
    %s54 = scalar_select %p53, %s52, 0
    %s55 = smul.u32 2, %s54
    %s56 = sadd.s32 0, 0
    %p57 = scmp.lt.s32.totalorder %s56, 0
    %s58 = scalar_select %p57, %s56, 0
    %s59 = smul.u32 2, %s58
    %p60 = scmp.eq.s32.totalorder 0, 0
    // Predicated region
    $region18: #{tpu_custom_call.1} parent=1 // pred_check
      %p61 = pneg %p60
    $region19: #{tpu_custom_call.1} parent=1 // pred_check_branch
      %63 = sbr.rel (%p61) target = $region21
    $region20: #{tpu_custom_call.1} parent=1 // pred_region
      %64 = vst [vmem:[#allocation7] sm:$0xff] 0.0
    $region21: #{tpu_custom_call.1} parent=1 // pred_fallthru
      _
    %v65 = vld [vmem:[#allocation2] sm:$0xff]
    %v66 = vld [vmem:[#allocation2 + $0x8] sm:$0xff]
    %v67 = vld [vmem:[#allocation5] sm:$0xff]
    %v68 = vld [vmem:[#allocation5 + $0x8] sm:$0xff]
    %v69 = vlog2.pop %v65
    %v70 = vmul.f32 %v69, 0.6931472
    %v71 = vlog2.pop %v66
    %v72 = vmul.f32 %v71, 0.6931472
    %v73 = vmax.f32 %v70, -100.0
    %v74 = vmax.f32 %v72, -100.0
    %v75 = vsub.f32 0.0, %v65
    %v76 = vsub.f32 0.0, %v66
    %v77 = vadd.f32 %v75, 1.0
    %v78 = vlog2.pop %v77
    %v79 = vmul.f32 %v78, 0.6931472
    %v80 = vmul.f32 -0.5, %v75
    %v81 = vadd.f32 %v80, 1.0
    %v82 = vmul.f32 %v81, %v75
    %v83 = vand.u32 2147483647, %v75
    %vm84 = vcmp.lt.f32.partialorder %v83, 0.0004427343
    %v85 = vsel %vm84, %v82, %v79
    %v86 = vadd.f32 %v76, 1.0
    %v87 = vlog2.pop %v86
    %v88 = vmul.f32 %v87, 0.6931472
    %v89 = vmul.f32 -0.5, %v76
    %v90 = vadd.f32 %v89, 1.0
    %v91 = vmul.f32 %v90, %v76
    %v92 = vand.u32 2147483647, %v76
    %vm93 = vcmp.lt.f32.partialorder %v92, 0.0004427343
    %v94 = vsel %vm93, %v91, %v88
    %v95 = vmax.f32 %v85, -100.0
    %v96 = vmax.f32 %v94, -100.0
    %v97 = vmul.f32 %v67, %v73
    %v98 = vmul.f32 %v68, %v74
    %v99 = vsub.f32 1.0, %v67
    %v100 = vsub.f32 1.0, %v68
    %v101 = vmul.f32 %v99, %v95
    %v102 = vmul.f32 %v100, %v96
    %v103 = vadd.f32 %v97, %v101
    %v104 = vadd.f32 %v98, %v102
    %v105 = vsub.f32 0.0, %v103
    %v106 = vsub.f32 0.0, %v104
    %v107 = vld [vmem:[#allocation7] sm:$0xff]
    %v108 = vadd.f32 %v105, %v106
    %v109 = vadd.f32 %v107, %v108
    %110 = vst [vmem:[#allocation7] sm:$0xff] %v109
    // Predicated region
    $region22: #{tpu_custom_call.1} parent=1 // pred_check
      _
    $region23: #{tpu_custom_call.1} parent=1 // pred_check_branch
      %112 = sbr.rel (0) target = $region25
    $region24: #{tpu_custom_call.1} parent=1 // pred_region
      %s114 = ssub.s32 128, 128
      %115 = vsyncadd [#allocation4], %s114
      %s117 = sshll.u32 [#allocation7], 4
      %s118 = int_to_ptr.vmem [resolvable:$true] %s117
      %120 = dma.vmem_to_hbm [thread:$0]  %s118, 128, %s2, [#allocation4]
    $region25: #{tpu_custom_call.1} parent=1 // pred_fallthru
      _
    // Predicated region
    $region26: #{tpu_custom_call.1} parent=1 // pred_check
      _
    $region27: #{tpu_custom_call.1} parent=1 // pred_check_branch
      %122 = sbr.rel (0) target = $region29
    $region28: #{tpu_custom_call.1} parent=1 // pred_region
      %123 = dma.done [#allocation4], 128
    $region29: #{tpu_custom_call.1} parent=1 // pred_fallthru
      _
    %124 = vsyncpa [#allocation3], 1
    %125 = vsyncpa [#allocation6], 1
    %126 = vsyncpa [#allocation4], 1

</llo_original>
